<compile_context>
chip_gen: v6e
topology: v6e:2x2x1
jax: 0.10.0
libtpu: 0.0.40
codegen_flags: <defaults>
</compile_context>

<pallas_src>
import jax
import jax.numpy as jnp
from jax.experimental import pallas as pl
from jax.experimental.pallas import tpu as pltpu


def _sublane_pack(itemsize):
    # Sub-32-bit dtypes pack along sublanes: f32 -> 8, bf16 -> 16, int8/fp8 -> 32.
    return {4: 8, 2: 16, 1: 32}.get(int(itemsize), 8)


def _padded_plane_bytes(H, W, itemsize):
    """VMEM footprint of one (H, W) plane including lane/sublane padding."""
    sub = _sublane_pack(itemsize)
    hp = -(-H // sub) * sub
    wp = -(-W // 128) * 128
    return hp * wp * int(itemsize)


def _vmem_budget():
    """(input block budget, scoped vmem limit, physical vmem capacity) per generation."""
    cap_bytes = None
    try:
        info = pltpu.get_tpu_info()
        cap_bytes = int(getattr(info, "vmem_capacity_bytes", 0)) or None
    except Exception:
        cap_bytes = None
    if cap_bytes is None:
        cap_bytes = 64 << 20                      # conservative: v7x per-TC VMEM
    if cap_bytes >= (96 << 20):                   # v5e / v6e: 128 MiB VMEM
        return (8 << 20), (96 << 20), cap_bytes
    return (4 << 20), (44 << 20), cap_bytes       # v7x: 64 MiB per TensorCore


def _pick_block_channels(total, padded_plane_bytes, block_budget_bytes, requested=None):
    """Pick channel-planes per block: fit the (padded) VMEM budget, prefer a
    multi-block / even-length grid (v7x 2-TC balance), then the largest block."""
    if requested is not None:
        cap = int(requested)
    else:
        cap = block_budget_bytes // max(1, padded_plane_bytes)
    cap = max(1, min(total, cap))
    best, best_key = 1, None
    for d in range(1, cap + 1):
        if total % d:
            continue
        n = total // d
        key = (1 if n >= 2 else 0, 1 if n % 2 == 0 else 0, d)
        if best_key is None or key > best_key:
            best_key, best = key, d
    return best


def _make_tv_loss_kernel(H, W, inv_count_h, inv_count_w):
    def kernel(x_ref, out_ref):
        # Single upcast of the VMEM-resident block; diffs in f32 (matches the
        # reference numerics; v5e has no bf16 VALU anyway).
        xf = x_ref[...].astype(jnp.float32)                       # (cb, H, W)

        # H-direction partial, pre-scaled by 1/count_h.  Reduce the channel
        # axis first (pure VPU vreg adds), then one cross-sublane reduce.
        if H > 1:
            dh = xf[:, 1:, :] - xf[:, :-1, :]                     # (cb, H-1, W)
            hp = jnp.sum(jnp.sum(dh * dh, axis=0, keepdims=True),
                         axis=1, keepdims=True)                   # (1, 1, W)
            out_ref[...] = hp * inv_count_h
        else:
            out_ref[...] = jnp.zeros((1, 1, W), jnp.float32)

        # W-direction partial, pre-scaled by 1/count_w and folded into the
        # first W-1 lanes of the same lane-dense (1, 1, W) output block.
        if W > 1:
            dw = xf[:, :, 1:] - xf[:, :, :-1]                     # (cb, H, W-1)
            wp = jnp.sum(jnp.sum(dw * dw, axis=0, keepdims=True),
                         axis=1, keepdims=True)                   # (1, 1, W-1)
            out_ref[:, :, : W - 1] = out_ref[:, :, : W - 1] + wp * inv_count_w

    return kernel


def tv_loss(x, tvloss_weight: float = 1.0, block_channels=None):
    """Pallas TVLoss forward. x: (B, C, H, W) float array -> scalar float32."""
    B, C, H, W = x.shape
    BC = B * C
    xr = x.reshape(BC, H, W)                      # free collapse; W stays on lanes
    itemsize = x.dtype.itemsize

    block_budget, vmem_limit, vmem_cap = _vmem_budget()
    plane_in = _padded_plane_bytes(H, W, itemsize)
    plane_f32 = _padded_plane_bytes(H, W, 4)

    cb = _pick_block_channels(BC, plane_in, block_budget, block_channels)
    nblk = BC // cb

    # Scoped-VMEM safeguard: 2x double-buffered input + ~4x f32 temporaries
    # (upcast block, dh, dw, squares) + output double buffer + slack; never
    # request more than ~90% of physical VMEM.
    needed = 2 * cb * plane_in + 4 * cb * plane_f32 + 2 * (128 * 128 * 4) + (1 << 20)
    vmem_limit = min(max(vmem_limit, needed), int(vmem_cap * 0.9))

    # Pre-computed scale factors (H==1 / W==1: PyTorch yields inf/nan; we drop
    # the degenerate term instead of dividing by zero at trace time).
    count_h = C * (H - 1) * W
    count_w = C * H * (W - 1)
    inv_h = (1.0 / count_h) if count_h > 0 else 0.0
    inv_w = (1.0 / count_w) if count_w > 0 else 0.0

    kernel = _make_tv_loss_kernel(H, W, inv_h, inv_w)

    # Advisory: bandwidth-bound streaming reduction (~6 flops/elem, one read/elem).
    cost = pl.CostEstimate(
        flops=6 * BC * H * W,
        transcendentals=0,
        bytes_accessed=BC * H * W * itemsize + nblk * W * 4,
    )

    parts = pl.pallas_call(
        kernel,
        grid=(nblk,),
        in_specs=[pl.BlockSpec((cb, H, W), lambda i: (i, 0, 0))],
        out_specs=pl.BlockSpec((1, 1, W), lambda i: (i, 0, 0)),
        out_shape=jax.ShapeDtypeStruct((nblk, 1, W), jnp.float32),
        compiler_params=pltpu.CompilerParams(
            dimension_semantics=("parallel",),     # v7x: shard stream over 2 TCs
            vmem_limit_bytes=int(vmem_limit),
        ),
        cost_estimate=cost,
    )(xr)

    # Partials are already divided by count_h / count_w in-kernel; the tiny
    # cross-block / cross-lane reduction + final scaling happens in XLA.
    return (2.0 * float(tvloss_weight) / float(B)) * jnp.sum(parts)


def tv_loss_ref(x, tvloss_weight: float = 1.0):
    """Pure-JAX reference mirroring the PyTorch module."""
    x = x.astype(jnp.float32)
    B, C, H, W = x.shape
    count_h = C * (H - 1) * W
    count_w = C * H * (W - 1)
    h_tv = jnp.sum((x[:, :, 1:, :] - x[:, :, : H - 1, :]) ** 2)
    w_tv = jnp.sum((x[:, :, :, 1:] - x[:, :, :, : W - 1]) ** 2)
    return tvloss_weight * 2.0 * (h_tv / count_h + w_tv / count_w) / B


if __name__ == "__main__":
    key = jax.random.PRNGKey(0)
    x = jax.random.normal(key, (2, 4, 16, 16), dtype=jnp.float32)

    # Default path (generation-aware block size; prefers a multi-block grid).
    out = jax.block_until_ready(tv_loss(x, tvloss_weight=1.0))
    ref = jax.block_until_ready(tv_loss_ref(x, tvloss_weight=1.0))
    assert jnp.allclose(out, ref, rtol=1e-5, atol=1e-6), (out, ref)

    # Forced multi-block grid: exercises the pipelined index_maps and the
    # per-block partial-sum path (grid of 4 steps).
    out_tiled = jax.block_until_ready(tv_loss(x, tvloss_weight=1.0, block_channels=2))
    assert jnp.allclose(out_tiled, ref, rtol=1e-5, atol=1e-6), (out_tiled, ref)

    # bf16 input: DMA stream stays bf16, upcast to f32 in-vreg before the diff.
    xb = x.astype(jnp.bfloat16)
    out_bf16 = jax.block_until_ready(tv_loss(xb, tvloss_weight=2.0))
    ref_bf16 = jax.block_until_ready(tv_loss_ref(xb, tvloss_weight=2.0))
    assert jnp.allclose(out_bf16, ref_bf16, rtol=2e-2, atol=2e-2), (out_bf16, ref_bf16)

    print("KERNEL_OK")
</pallas_src>

<mosaic_0001>
module attributes {stable_mosaic.version = 11 : i64} {
  func.func @kernel(%arg0: i32, %arg1: memref<4x16x16xf32, #tpu.memory_space<vmem>>, %arg2: memref<1x1x16xf32, #tpu.memory_space<vmem>>) attributes {dimension_semantics = [#tpu.dimension_semantics<parallel>], iteration_bounds = array<i64: 2>, scalar_prefetch = 0 : i64, scratch_operands = 0 : i64, tpu.core_type = #tpu.core_type<tc>, window_params = [{transform_indices = @transform_0, window_bounds = array<i64: 4, 16, 16>}, {transform_indices = @transform_1, window_bounds = array<i64: 1, 1, 16>}]} {
    %c0 = arith.constant 0 : index
    %c0_0 = arith.constant 0 : index
    %c0_1 = arith.constant 0 : index
    %0 = vector.load %arg1[%c0, %c0_0, %c0_1] : memref<4x16x16xf32, #tpu.memory_space<vmem>>, vector<4x16x16xf32>
    %1 = vector.extract_strided_slice %0 {offsets = [0, 1, 0], sizes = [4, 15, 16], strides = [1, 1, 1]} : vector<4x16x16xf32> to vector<4x15x16xf32>
    %2 = vector.extract_strided_slice %0 {offsets = [0, 0, 0], sizes = [4, 15, 16], strides = [1, 1, 1]} : vector<4x16x16xf32> to vector<4x15x16xf32>
    %3 = arith.subf %1, %2 : vector<4x15x16xf32>
    %4 = arith.mulf %3, %3 : vector<4x15x16xf32>
    %cst = arith.constant dense<0.000000e+00> : vector<15x16xf32>
    %5 = vector.multi_reduction <add>, %4, %cst [0] : vector<4x15x16xf32> to vector<15x16xf32>
    %6 = vector.shape_cast %5 : vector<15x16xf32> to vector<1x15x16xf32>
    %cst_2 = arith.constant dense<0.000000e+00> : vector<1x16xf32>
    %7 = vector.multi_reduction <add>, %6, %cst_2 [1] : vector<1x15x16xf32> to vector<1x16xf32>
    %8 = vector.shape_cast %7 : vector<1x16xf32> to vector<1x1x16xf32>
    %cst_3 = arith.constant 0.00104166672 : f32
    %9 = vector.broadcast %cst_3 : f32 to vector<1x1x16xf32>
    %10 = arith.mulf %8, %9 : vector<1x1x16xf32>
    %c0_4 = arith.constant 0 : index
    %c0_5 = arith.constant 0 : index
    %c0_6 = arith.constant 0 : index
    %11 = vector.load %arg2[%c0_4, %c0_5, %c0_6] : memref<1x1x16xf32, #tpu.memory_space<vmem>>, vector<1x1x16xf32>
    tpu.vector_store %arg2[%c0_4, %c0_5, %c0_6], %10 {strides = array<i32>} : memref<1x1x16xf32, #tpu.memory_space<vmem>>, vector<1x1x16xf32>,
    %12 = vector.extract_strided_slice %0 {offsets = [0, 0, 1], sizes = [4, 16, 15], strides = [1, 1, 1]} : vector<4x16x16xf32> to vector<4x16x15xf32>
    %13 = vector.extract_strided_slice %0 {offsets = [0, 0, 0], sizes = [4, 16, 15], strides = [1, 1, 1]} : vector<4x16x16xf32> to vector<4x16x15xf32>
    %14 = arith.subf %12, %13 : vector<4x16x15xf32>
    %15 = arith.mulf %14, %14 : vector<4x16x15xf32>
    %cst_7 = arith.constant dense<0.000000e+00> : vector<16x15xf32>
    %16 = vector.multi_reduction <add>, %15, %cst_7 [0] : vector<4x16x15xf32> to vector<16x15xf32>
    %17 = vector.shape_cast %16 : vector<16x15xf32> to vector<1x16x15xf32>
    %cst_8 = arith.constant dense<0.000000e+00> : vector<1x15xf32>
    %18 = vector.multi_reduction <add>, %17, %cst_8 [1] : vector<1x16x15xf32> to vector<1x15xf32>
    %19 = vector.shape_cast %18 : vector<1x15xf32> to vector<1x1x15xf32>
    %c0_9 = arith.constant 0 : index
    %c0_10 = arith.constant 0 : index
    %c0_11 = arith.constant 0 : index
    %20 = vector.load %arg2[%c0_9, %c0_10, %c0_11] : memref<1x1x16xf32, #tpu.memory_space<vmem>>, vector<1x1x15xf32>
    %cst_12 = arith.constant 0.00104166672 : f32
    %21 = vector.broadcast %cst_12 : f32 to vector<1x1x15xf32>
    %22 = arith.mulf %19, %21 : vector<1x1x15xf32>
    %23 = arith.addf %20, %22 : vector<1x1x15xf32>
    %c0_13 = arith.constant 0 : index
    %c0_14 = arith.constant 0 : index
    %c0_15 = arith.constant 0 : index
    %24 = vector.load %arg2[%c0_13, %c0_14, %c0_15] : memref<1x1x16xf32, #tpu.memory_space<vmem>>, vector<1x1x15xf32>
    tpu.vector_store %arg2[%c0_13, %c0_14, %c0_15], %23 {strides = array<i32>} : memref<1x1x16xf32, #tpu.memory_space<vmem>>, vector<1x1x15xf32>,
    return
  }
  func.func @transform_0(%arg0: i32) -> (i32, i32, i32) {
    %c0_i32 = arith.constant 0 : i32
    %c0_i32_0 = arith.constant 0 : i32
    %c0_i32_1 = arith.constant 0 : i32
    return %arg0, %c0_i32, %c0_i32_0 : i32, i32, i32
  }
  func.func @transform_1(%arg0: i32) -> (i32, i32, i32) {
    %c0_i32 = arith.constant 0 : i32
    %c0_i32_0 = arith.constant 0 : i32
    %c0_i32_1 = arith.constant 0 : i32
    return %arg0, %c0_i32, %c0_i32_0 : i32, i32, i32
  }
}

</mosaic_0001>

<llo_original>
// kernel: tpu_custom_call.1
$region0: #{tpu_custom_call.1}
  #allocation0 [shape = 'u32[]', space=smem, size = 0x4, offset = 0x4, fixed_abs, tag = 'smem constant byte address 0x4 - core index']
  #allocation1 [shape = 'u32[144,128]{1,0:T(1,128)}', space=vmem, size = 0x12000, scoped, tag = 'internal scratch']
  %s0 = inlined_call_operand.hbm [shape: f32[8,16,16], index: 0, kind: input, shape index: {}]
  %s1 = inlined_call_operand.hbm [shape: f32[2,1,16], index: 1, kind: output, shape index: {}]
  %s2 = sld [smem:[#allocation0]]
  $region41: #{tpu_custom_call.1} parent=0
    _
  %s4 = ssub.s32 1, %s2
  %s5 = scalar_select 0, %s4, %s2
  $region1: #{tpu_custom_call.1} parent=0
    #allocation2 [shape = 'u8[65536]{0}', space=vmem, size = 0x10000, scoped, tag = 'input window, operand 0']
    #allocation3 [shape = 's32[2]{0}', space=sflag, size = 0x8, scoped, tag = 'scoped memory for tpu_custom_call.1']
    #allocation4 [shape = 's32[2]{0}', space=sflag, size = 0x8, scoped, tag = 'scoped memory for tpu_custom_call.1']
    #allocation5 [shape = 'u8[1024]{0}', space=vmem, size = 0x400, scoped, tag = 'output window, operand 0']
    %6 = vsyncpa [#allocation3], 0
    %s7 = scalar_lea.sflag [#allocation3], 1
    %8 = vsyncpa %s7, 0
    %9 = vsyncpa [#allocation4], 0
    %s10 = scalar_lea.sflag [#allocation4], 1
    %11 = vsyncpa %s10, 0
    loop: start=0, step=1, limit=4
    $region2: #{tpu_custom_call.1} parent=1 // loop_pre_header
      _
    $region3: #{tpu_custom_call.1} parent=1 // loop_header
      %s13 = sphi 0, %s17
      %p14 = scmp.ge.s32.totalorder %s13, 4
      %s23 = sphi 0, %s25
      %s26 = sphi 0, %s23
      %s27 = sphi 0, %s26
      %s43 = sphi 0, %s27
      %s49 = sphi 0, %s51
      %s52 = sphi 0, %s49
      %s53 = sphi 0, %s52
      %s69 = sphi 0, %s53
    $region4: #{tpu_custom_call.1} parent=1 // loop_header_branch
      %16 = sbr.rel (%p14) target = $region8
    $region5: #{tpu_custom_call.1} parent=1 // loop_body
      %s18 = ssub.s32 %s13, 1
      %s19 = ssub.s32 %s13, 2
      %s20 = sadd.s32 %s13, 1
      %s21 = ssub.s32 %s13, %s20
      %p22 = scmp.eq.s32.totalorder %s21, 0
      %s24 = sadd.s32 %s23, 1
      %s25 = scalar_select %p22, %s23, %s24
      %p28 = pneg %p22
      %p29 = scmp.eq.s32.totalorder %s13, 1
      %p30 = por %p28, %p29
      %p31 = scmp.ne.s32.totalorder %s23, %s26
      %p32 = scmp.eq.s32.totalorder %s13, 0
      %p33 = por %p31, %p32
      %p34 = scmp.ne.s32.totalorder %s23, %s26
      %p35 = scmp.eq.s32.totalorder %s18, 1
      %p36 = por %p34, %p35
      %p37 = scmp.ne.s32.totalorder %s26, %s27
      %p38 = scmp.eq.s32.totalorder %s18, 0
      %p39 = por %p37, %p38
      %p40 = scmp.ne.s32.totalorder %s26, %s27
      %p41 = scmp.eq.s32.totalorder %s19, 1
      %p42 = por %p40, %p41
      %p44 = scmp.ne.s32.totalorder %s27, %s43
      %p45 = scmp.eq.s32.totalorder %s19, 0
      %p46 = por %p44, %p45
      %s47 = ssub.s32 %s13, %s20
      %p48 = scmp.eq.s32.totalorder %s47, 0
      %s50 = sadd.s32 %s49, 1
      %s51 = scalar_select %p48, %s49, %s50
      %p54 = pneg %p48
      %p55 = scmp.eq.s32.totalorder %s13, 1
      %p56 = por %p54, %p55
      %p57 = scmp.ne.s32.totalorder %s49, %s52
      %p58 = scmp.eq.s32.totalorder %s13, 0
      %p59 = por %p57, %p58
      %p60 = scmp.ne.s32.totalorder %s49, %s52
      %p61 = scmp.eq.s32.totalorder %s18, 1
      %p62 = por %p60, %p61
      %p63 = scmp.ne.s32.totalorder %s52, %s53
      %p64 = scmp.eq.s32.totalorder %s18, 0
      %p65 = por %p63, %p64
      %p66 = scmp.ne.s32.totalorder %s52, %s53
      %p67 = scmp.eq.s32.totalorder %s19, 1
      %p68 = por %p66, %p67
      %p70 = scmp.ne.s32.totalorder %s53, %s69
      %p71 = scmp.eq.s32.totalorder %s19, 0
      %p72 = por %p70, %p71
      %p73 = scmp.le.s32.totalorder 1, %s13
      %p74 = scmp.lt.s32.totalorder %s13, 3
      %p75 = pnand %p73, %p74
      %p76 = pneg %p75
      // Predicated region
      $region9: #{tpu_custom_call.1} parent=5 // pred_check
        _
      $region10: #{tpu_custom_call.1} parent=5 // pred_check_branch
        %78 = sbr.rel (%p75) target = $region12
      $region11: #{tpu_custom_call.1} parent=5 // pred_region
        %s79 = ssub.s32 %s13, 1
      $region12: #{tpu_custom_call.1} parent=5 // pred_fallthru
        _
      %p80 = scmp.lt.s32.totalorder %s13, 2
      // Predicated region
      $region13: #{tpu_custom_call.1} parent=5 // pred_check
        %p81 = pneg %p80
      $region14: #{tpu_custom_call.1} parent=5 // pred_check_branch
        %83 = sbr.rel (%p81) target = $region16
      $region15: #{tpu_custom_call.1} parent=5 // pred_region
        // Predicated region
        $region17: #{tpu_custom_call.1} parent=15 // pred_check
          %p84 = pneg %p33
        $region18: #{tpu_custom_call.1} parent=15 // pred_check_branch
          %86 = sbr.rel (%p84) target = $region20
        $region19: #{tpu_custom_call.1} parent=15 // pred_region
          %s87 = sand.u32 %s23, 1
          %s88 = scalar_lea.sflag [#allocation3], %s87
          %s89 = sand.u32 %s23, 1
          %s90 = smul.addr %s89, 64
          %s91 = scalar_lea.vmem [#allocation2], %s90
          %s92 = smul.u32 4, %s13
          %s94 = ssub.s32 1024, 1024
          %95 = vsyncadd %s88, %s94
          %s96 = smul.addr %s92, 2
          %s97 = smul.addr %s96, 128
          %s98 = scalar_lea.hbm %s0, %s97
          %s99 = sshll.u32 %s91, 4
          %s100 = int_to_ptr.vmem [resolvable:$true] %s99
          %105 = dma.hbm_to_vmem [thread:$0]  %s98, 1024, %s100, %s88, 128, 128, 8
        $region20: #{tpu_custom_call.1} parent=15 // pred_fallthru
          _
      $region16: #{tpu_custom_call.1} parent=5 // pred_fallthru
        _
      %p106 = scmp.le.s32.totalorder 1, %s13
      %p107 = scmp.lt.s32.totalorder %s13, 3
      %p108 = pnand %p106, %p107
      %p109 = pneg %p108
      // Predicated region
      $region21: #{tpu_custom_call.1} parent=5 // pred_check
        _
      $region22: #{tpu_custom_call.1} parent=5 // pred_check_branch
        %111 = sbr.rel (%p108) target = $region24
      $region23: #{tpu_custom_call.1} parent=5 // pred_region
        %s112 = ssub.s32 %s13, 1
        %s113 = sand.u32 %s26, 1
        %s114 = scalar_lea.sflag [#allocation3], %s113
        %s115 = sand.u32 %s26, 1
        %s116 = smul.addr %s115, 64
        %s117 = scalar_lea.vmem [#allocation2], %s116
        // Predicated region
        $region25: #{tpu_custom_call.1} parent=23 // pred_check
          %p118 = pneg %p39
        $region26: #{tpu_custom_call.1} parent=23 // pred_check_branch
          %120 = sbr.rel (%p118) target = $region28
        $region27: #{tpu_custom_call.1} parent=23 // pred_region
          %121 = dma.done %s114, 1024
        $region28: #{tpu_custom_call.1} parent=23 // pred_fallthru
          _
        %s122 = sand.u32 %s26, 1
        %s123 = scalar_lea.sflag [#allocation3], %s122
        %s124 = sand.u32 %s26, 1
        %s125 = smul.addr %s124, 64
        %s126 = scalar_lea.vmem [#allocation2], %s125
        %p127 = pneg %p39
        %p128 = pneg %p36
        %p129 = pneg %p65
        %p130 = pneg %p62
        %s131 = sand.u32 %s52, 1
        %s132 = scalar_lea.sflag [#allocation4], %s131
        %s133 = sand.u32 %s52, 1
        %s134 = scalar_lea.vmem [#allocation5], %s133
        %s135 = smul.u32 4, %s18
        %v136 = vld [vmem:[%s117] sm:$0xff]
        %v137 = vld [vmem:[%s117 + $0x8] sm:$0xff]
        %v138 = vld [vmem:[%s117 + $0x10] sm:$0xff]
        %v139 = vld [vmem:[%s117 + $0x18] sm:$0xff]
        %v140 = vld [vmem:[%s117 + $0x20] sm:$0xff]
        %v141 = vld [vmem:[%s117 + $0x28] sm:$0xff]
        %v142 = vld [vmem:[%s117 + $0x30] sm:$0xff]
        %v143 = vld [vmem:[%s117 + $0x38] sm:$0xff]
        %vm152 = vcmask 1040384
        %v153 = vrot.slane %v136, 7
        %v154 = vrot.slane %v137, 7
        %v155 = vsel %vm152, %v153, %v154
        %v156 = vrot.slane %v138, 7
        %v157 = vrot.slane %v139, 7
        %v158 = vsel %vm152, %v156, %v157
        %v159 = vrot.slane %v140, 7
        %v160 = vrot.slane %v141, 7
        %v161 = vsel %vm152, %v159, %v160
        %v162 = vrot.slane %v142, 7
        %v163 = vrot.slane %v143, 7
        %v164 = vsel %vm152, %v162, %v163
        %v173 = vsub.f32 %v136, %v153
        %v174 = vsub.f32 %v137, %v155
        %v175 = vsub.f32 %v138, %v156
        %v176 = vsub.f32 %v139, %v158
        %v177 = vsub.f32 %v140, %v159
        %v178 = vsub.f32 %v141, %v161
        %v179 = vsub.f32 %v142, %v162
        %v180 = vsub.f32 %v143, %v164
        %v181 = vmul.f32 %v173, %v173
        %v182 = vmul.f32 %v174, %v174
        %v183 = vmul.f32 %v175, %v175
        %v184 = vmul.f32 %v176, %v176
        %v185 = vmul.f32 %v177, %v177
        %v186 = vmul.f32 %v178, %v178
        %v187 = vmul.f32 %v179, %v179
        %v188 = vmul.f32 %v180, %v180
        %vm189 = vcmask 130049
        %v190 = vsel %vm189, %v181, 0.0
        %v191 = vsel %vm189, %v183, 0.0
        %v192 = vadd.f32 %v190, %v191
        %v193 = vsel %vm189, %v185, 0.0
        %v194 = vadd.f32 %v192, %v193
        %v195 = vsel %vm189, %v187, 0.0
        %v196 = vadd.f32 %v194, %v195
        %vm197 = vcmask 130048
        %v198 = vsel %vm197, %v182, 0.0
        %v199 = vsel %vm197, %v184, 0.0
        %v200 = vadd.f32 %v198, %v199
        %v201 = vsel %vm197, %v186, 0.0
        %v202 = vadd.f32 %v200, %v201
        %v203 = vsel %vm197, %v188, 0.0
        %v204 = vadd.f32 %v202, %v203
        %vm207 = vcmask 1046528
        %v208 = vrot.slane %v196, 1
        %v209 = vrot.slane %v204, 1
        %v210 = vsel %vm207, %v208, %v209
        %v213 = vsel %vm197, %v210, 0.0
        %vm214 = vcmask 129024
        %v215 = vsel %vm214, %v209, 0.0
        %v216 = vadd.f32 %v213, %v215
        %v217 = vrot.slane %v216, 4
        %v218 = vadd.f32 %v216, %v217
        %v219 = vrot.slane %v218, 2
        %v220 = vadd.f32 %v218, %v219
        %v221 = vrot.slane %v220, 1
        %v222 = vadd.f32 %v220, %v221
        %v223 = vmul.f32 %v222, 0.0010416667
        %vm224 = vcmask 122880
        %225 = vst.msk [vmem:[%s134] sm:$0x1] %vm224, %v223
        %226 = vrot.lane.b32.xlu0 %v136, 1
        %v227 = vpop.permute.xlu0 %226
        %228 = vrot.lane.b32.xlu0 %v137, 1
        %v229 = vpop.permute.xlu0 %228
        %230 = vrot.lane.b32.xlu0 %v138, 1
        %v231 = vpop.permute.xlu0 %230
        %232 = vrot.lane.b32.xlu0 %v139, 1
        %v233 = vpop.permute.xlu0 %232
        %234 = vrot.lane.b32.xlu0 %v140, 1
        %v235 = vpop.permute.xlu0 %234
        %236 = vrot.lane.b32.xlu0 %v141, 1
        %v237 = vpop.permute.xlu0 %236
        %238 = vrot.lane.b32.xlu0 %v142, 1
        %v239 = vpop.permute.xlu0 %238
        %240 = vrot.lane.b32.xlu0 %v143, 1
        %v241 = vpop.permute.xlu0 %240
        %v250 = vsub.f32 %v136, %v227
        %v251 = vsub.f32 %v137, %v229
        %v252 = vsub.f32 %v138, %v231
        %v253 = vsub.f32 %v139, %v233
        %v254 = vsub.f32 %v140, %v235
        %v255 = vsub.f32 %v141, %v237
        %v256 = vsub.f32 %v142, %v239
        %v257 = vsub.f32 %v143, %v241
        %v258 = vmul.f32 %v250, %v250
        %v259 = vmul.f32 %v251, %v251
        %v260 = vmul.f32 %v252, %v252
        %v261 = vmul.f32 %v253, %v253
        %v262 = vmul.f32 %v254, %v254
        %v263 = vmul.f32 %v255, %v255
        %v264 = vmul.f32 %v256, %v256
        %v265 = vmul.f32 %v257, %v257
        %vm266 = vcmask 130056
        %v267 = vsel %vm266, %v258, 0.0
        %v268 = vsel %vm266, %v260, 0.0
        %v269 = vadd.f32 %v267, %v268
        %v270 = vsel %vm266, %v262, 0.0
        %v271 = vadd.f32 %v269, %v270
        %v272 = vsel %vm266, %v264, 0.0
        %v273 = vadd.f32 %v271, %v272
        %v274 = vsel %vm266, %v259, 0.0
        %v275 = vsel %vm266, %v261, 0.0
        %v276 = vadd.f32 %v274, %v275
        %v277 = vsel %vm266, %v263, 0.0
        %v278 = vadd.f32 %v276, %v277
        %v279 = vsel %vm266, %v265, 0.0
        %v280 = vadd.f32 %v278, %v279
        %v281 = vsel %vm266, %v273, 0.0
        %v282 = vsel %vm266, %v280, 0.0
        %v283 = vadd.f32 %v281, %v282
        %v284 = vrot.slane %v283, 4
        %v285 = vadd.f32 %v283, %v284
        %v286 = vrot.slane %v285, 2
        %v287 = vadd.f32 %v285, %v286
        %v288 = vrot.slane %v287, 1
        %v289 = vadd.f32 %v287, %v288
        %v290 = vld [vmem:[%s134] sm:$0x1]
        %v291 = vmul.f32 %v289, 0.0010416667
        %v294 = vunpack.c.l.s4 1966171168
        %v295 = vunpack.c.0.s8 %v294
        %v296 = vlaneseq
        %v297 = vshrl.u32 %v296, 7
        %v298 = vsub.s32 %v295, %v297
        %v299 = vrot.slane %v291, %v298
        %v301 = vunpack.c.l.s4 1966171168
        %v302 = vunpack.c.0.s8 %v301
        %v303 = vlaneseq
        %v304 = vshrl.u32 %v303, 7
        %v305 = vsub.s32 %v302, %v304
        %v306 = vrot.slane %v299, %v305
        %307 = vrot.lane.b32.xlu0 %v306, 127
        %v308 = vpop.permute.xlu0 %307
        %v310 = vadd.f32 %v290, %v308
        %vm311 = vcmask 114688
        %312 = vst.msk [vmem:[%s134] sm:$0x1] %vm311, %v310
        %s313 = sand.u32 %s52, 1
        %s314 = scalar_lea.sflag [#allocation4], %s313
        %s315 = sand.u32 %s52, 1
        %s316 = scalar_lea.vmem [#allocation5], %s315
        // Predicated region
        $region29: #{tpu_custom_call.1} parent=23 // pred_check
          %p317 = pneg %p62
        $region30: #{tpu_custom_call.1} parent=23 // pred_check_branch
          %319 = sbr.rel (%p317) target = $region32
        $region31: #{tpu_custom_call.1} parent=23 // pred_region
          %s321 = ssub.s32 16, 16
          %322 = vsyncadd %s314, %s321
          %s323 = smul.addr %s18, 16
          %s324 = scalar_lea.hbm %s1, %s323
          %s326 = sshll.u32 %s316, 4
          %s327 = int_to_ptr.vmem [resolvable:$true] %s326
          %329 = dma.vmem_to_hbm [thread:$0]  %s327, 16, %s324, %s314
        $region32: #{tpu_custom_call.1} parent=23 // pred_fallthru
          _
      $region24: #{tpu_custom_call.1} parent=5 // pred_fallthru
        _
      %p330 = scmp.le.s32.totalorder 2, %s13
      // Predicated region
      $region33: #{tpu_custom_call.1} parent=5 // pred_check
        %p331 = pneg %p330
      $region34: #{tpu_custom_call.1} parent=5 // pred_check_branch
        %333 = sbr.rel (%p331) target = $region36
      $region35: #{tpu_custom_call.1} parent=5 // pred_region
        %s334 = ssub.s32 %s13, 2
        // Predicated region
        $region37: #{tpu_custom_call.1} parent=35 // pred_check
          %p335 = pneg %p68
        $region38: #{tpu_custom_call.1} parent=35 // pred_check_branch
          %337 = sbr.rel (%p335) target = $region40
        $region39: #{tpu_custom_call.1} parent=35 // pred_region
          %s338 = sand.u32 %s53, 1
          %s339 = scalar_lea.sflag [#allocation4], %s338
          %s340 = sand.u32 %s53, 1
          %s341 = scalar_lea.vmem [#allocation5], %s340
          %342 = dma.done %s339, 16
        $region40: #{tpu_custom_call.1} parent=35 // pred_fallthru
          _
      $region36: #{tpu_custom_call.1} parent=5 // pred_fallthru
        _
    $region6: #{tpu_custom_call.1} parent=1 // loop_footer
      %s17 = sadd.s32 1, %s13
    $region7: #{tpu_custom_call.1} parent=1 // loop_footer_branch
      %12 = sbr.rel target = $region3
    $region8: #{tpu_custom_call.1} parent=1 // loop_exit
      _
    %343 = vsyncpa [#allocation3], 1
    %s344 = scalar_lea.sflag [#allocation3], 1
    %345 = vsyncpa %s344, 1
    %346 = vsyncpa [#allocation4], 1
    %s347 = scalar_lea.sflag [#allocation4], 1
    %348 = vsyncpa %s347, 1

</llo_original>
